<compile_context>
chip_gen: v5e
topology: v5e:2x2
jax: 0.10.0
libtpu: 0.0.40
codegen_flags: <defaults>
</compile_context>

<pallas_src>
import jax
import jax.numpy as jnp
from jax import lax
from jax.experimental import pallas as pl
from jax.experimental.pallas import tpu as pltpu

G = 8             # number of graphs in the batch
N = 16            # nodes per graph
D = 128           # hidden size (in_features == out_features)
NEG_INF = -1.0e12         # matches PyTorch's -1000000000000.0 mask value
LEAKY_SLOPE = 0.01        # nn.LeakyReLU() default negative slope


def _gat_fused_kernel(x_ref, adj_ref, w_ref, wa_ref, o_ref):
    x = x_ref[...]                                                            # (N, D)

    # h = x @ W   (MXU, f32 accumulation)
    h = jnp.dot(x, w_ref[...], preferred_element_type=jnp.float32)           # (N, D)

    # f1[i] = h[i].a[:D] = x[i].(W @ a[:D]) ;  f2[j] = h[j].a[D:] = x[j].(W @ a[D:])
    # Both depend only on x (not h) -> no serial MXU chain; both contract the
    # feature (lane) dim directly, so no transposes are materialized.
    f1 = lax.dot_general(x, wa_ref[0:1, :], (((1,), (1,)), ((), ())),
                         preferred_element_type=jnp.float32)                  # (N, 1)
    f2 = lax.dot_general(wa_ref[1:2, :], x, (((1,), (1,)), ((), ())),
                         preferred_element_type=jnp.float32)                  # (1, N)

    # e[i, j] = LeakyReLU(f1[i] + f2[j])
    e = f1 + f2                                                               # (N, N)
    e = jnp.where(e > 0, e, LEAKY_SLOPE * e)

    # attention = softmax(where(adj > 0, e, -1e12), dim=1)
    att = jnp.where(adj_ref[...] > 0, e, NEG_INF)
    m = jnp.max(att, axis=-1, keepdims=True)
    p = jnp.exp(att - m)
    denom = jnp.sum(p, axis=-1, keepdims=True)
    p = p / denom                      # exact divide (VALU slack) -> rows sum to 1
    # (attention dropout is identity in eval mode)

    hp = jnp.dot(p, h, preferred_element_type=jnp.float32)                    # (N, D)

    # concat=True -> ELU(alpha=1); clamp exp arg so no inf is generated.
    o_ref[...] = jnp.where(hp > 0, hp, jnp.exp(jnp.minimum(hp, 0.0)) - 1.0)


def gragh_attention(x, adj, w, a):
    """Forward of GraghAttention (one GraphAttentionLayer), eval mode.

    x:   (G, N, D) or (N, D)   node features (per graph)
    adj: (G, N, N) or (N, N)   adjacency (compared against 0)
    w:   (D, D)                weight
    a:   (2D, 1)               attention vector
    """
    single = (x.ndim == 2)
    if single:
        x, adj = x[None], adj[None]
    g, n, d = x.shape

    # Static parameter prep (eval mode): Wa[m] = W @ a_m, stacked as one (2, D)
    # lane-dense input -> one DMA, and breaks the h-dependency of f1/f2.
    a_stack = a.reshape(2, d)                 # row 0 = a[:D], row 1 = a[D:]
    wa = a_stack @ w.T                        # (2, D)

    out = pl.pallas_call(
        _gat_fused_kernel,
        out_shape=jax.ShapeDtypeStruct((g, n, d), jnp.float32),
        grid=(g,),
        in_specs=[
            pl.BlockSpec((None, n, d), lambda i: (i, 0, 0)),   # x    : per graph
            pl.BlockSpec((None, n, n), lambda i: (i, 0, 0)),   # adj  : per graph
            pl.BlockSpec((d, d),       lambda i: (0, 0)),      # W    : resident
            pl.BlockSpec((2, d),       lambda i: (0, 0)),      # Wa   : resident
        ],
        out_specs=pl.BlockSpec((None, n, d), lambda i: (i, 0, 0)),
        compiler_params=pltpu.CompilerParams(
            dimension_semantics=("parallel",)),                # split graphs across v7x TCs
    )(x, adj, w, wa)
    return out[0] if single else out


def gragh_attention_ref(x, adj, w, a):
    """Pure-JAX reference mirroring the PyTorch layer (eval mode), batched."""
    def one(xg, adjg):
        h = xg @ w
        d = h.shape[1]
        f1 = h @ a[:d]                        # (N, 1)
        f2 = h @ a[d:]                        # (N, 1)
        e = f1 + f2.T
        e = jnp.where(e > 0, e, LEAKY_SLOPE * e)
        att = jnp.where(adjg > 0, e, NEG_INF)
        att = jax.nn.softmax(att, axis=1)
        hp = att @ h
        return jnp.where(hp > 0, hp, jnp.exp(hp) - 1.0)
    return jax.vmap(one)(x, adj)


if __name__ == "__main__":
    key = jax.random.PRNGKey(0)
    kx, kadj, kw, ka = jax.random.split(key, 4)

    # batch of node-feature matrices
    x = jax.random.normal(kx, (G, N, D), dtype=jnp.float32)

    # random 0/1 adjacency with self-loops (float, module compares > 0)
    adj = (jax.random.uniform(kadj, (G, N, N)) < 0.4).astype(jnp.float32)
    adj = jnp.maximum(adj, jnp.eye(N, dtype=jnp.float32))

    # kaiming_uniform-style init for W (fan_in = D) and a (fan_in = 2D)
    bound_w = (6.0 / D) ** 0.5
    w = jax.random.uniform(kw, (D, D), jnp.float32, -bound_w, bound_w)
    bound_a = (6.0 / (2 * D)) ** 0.5
    a = jax.random.uniform(ka, (2 * D, 1), jnp.float32, -bound_a, bound_a)

    out = jax.jit(gragh_attention)(x, adj, w, a)
    out = jax.block_until_ready(out)

    assert out.shape == (G, N, D) and out.dtype == jnp.float32
    assert bool(jnp.all(jnp.isfinite(out)))

    ref = gragh_attention_ref(x, adj, w, a)
    # exact softmax divide now; tolerance only covers MXU f32 rounding and the
    # reassociated (x @ (W a)) vs ((x W) . a) score path
    assert bool(jnp.allclose(out, ref, atol=1e-2, rtol=1e-2)), \
        float(jnp.max(jnp.abs(out - ref)))

    # single-graph (original module signature) still works
    out1 = jax.block_until_ready(jax.jit(gragh_attention)(x[0], adj[0], w, a))
    assert bool(jnp.allclose(out1, ref[0], atol=1e-2, rtol=1e-2))

    print("KERNEL_OK")
</pallas_src>

<mosaic_0001>
module attributes {stable_mosaic.version = 11 : i64} {
  func.func @_gat_fused_kernel(%arg0: i32, %arg1: memref<1x16x128xf32, #tpu.memory_space<vmem>>, %arg2: memref<1x16x16xf32, #tpu.memory_space<vmem>>, %arg3: memref<128x128xf32, #tpu.memory_space<vmem>>, %arg4: memref<2x128xf32, #tpu.memory_space<vmem>>, %arg5: memref<1x16x128xf32, #tpu.memory_space<vmem>>) attributes {dimension_semantics = [#tpu.dimension_semantics<parallel>], iteration_bounds = array<i64: 8>, scalar_prefetch = 0 : i64, scratch_operands = 0 : i64, tpu.core_type = #tpu.core_type<tc>, window_params = [{transform_indices = @transform_0, window_bounds = array<i64: 1, 16, 128>}, {transform_indices = @transform_1, window_bounds = array<i64: 1, 16, 16>}, {pipeline_mode = #tpu.pipeline_mode<synchronous>, transform_indices = @transform_2, window_bounds = array<i64: 128, 128>}, {pipeline_mode = #tpu.pipeline_mode<synchronous>, transform_indices = @transform_3, window_bounds = array<i64: 2, 128>}, {transform_indices = @transform_4, window_bounds = array<i64: 1, 16, 128>}]} {
    %c0 = arith.constant 0 : index
    %c0_0 = arith.constant 0 : index
    %c0_1 = arith.constant 0 : index
    %0 = vector.load %arg1[%c0, %c0_0, %c0_1] : memref<1x16x128xf32, #tpu.memory_space<vmem>>, vector<1x16x128xf32>
    %1 = vector.shape_cast %0 : vector<1x16x128xf32> to vector<16x128xf32>
    %c0_2 = arith.constant 0 : index
    %c0_3 = arith.constant 0 : index
    %2 = vector.load %arg3[%c0_2, %c0_3] : memref<128x128xf32, #tpu.memory_space<vmem>>, vector<128x128xf32>
    %cst = arith.constant dense<0.000000e+00> : vector<16x128xf32>
    %3 = tpu.matmul %1, %2, %cst {dimension_numbers = #tpu.dot_dimension_numbers<[1], [0], [0], [1], [0, 0, 1, 1], [], []>} : vector<16x128xf32>, vector<128x128xf32>, vector<16x128xf32> -> vector<16x128xf32>
    %c0_4 = arith.constant 0 : index
    %c0_5 = arith.constant 0 : index
    %4 = vector.load %arg4[%c0_4, %c0_5] : memref<2x128xf32, #tpu.memory_space<vmem>>, vector<1x128xf32>
    %cst_6 = arith.constant dense<0.000000e+00> : vector<16x1xf32>
    %5 = tpu.matmul %1, %4, %cst_6 {dimension_numbers = #tpu.dot_dimension_numbers<[1], [1], [0], [0], [0, 0, 1, 0], [], []>} : vector<16x128xf32>, vector<1x128xf32>, vector<16x1xf32> -> vector<16x1xf32>
    %c1 = arith.constant 1 : index
    %c0_7 = arith.constant 0 : index
    %6 = vector.load %arg4[%c1, %c0_7] : memref<2x128xf32, #tpu.memory_space<vmem>>, vector<1x128xf32>
    %cst_8 = arith.constant dense<0.000000e+00> : vector<1x16xf32>
    %7 = tpu.matmul %6, %1, %cst_8 {dimension_numbers = #tpu.dot_dimension_numbers<[1], [1], [0], [0], [0, 0, 1, 0], [], []>} : vector<1x128xf32>, vector<16x128xf32>, vector<1x16xf32> -> vector<1x16xf32>
    %8 = vector.broadcast %5 : vector<16x1xf32> to vector<16x16xf32>
    %9 = vector.broadcast %7 : vector<1x16xf32> to vector<16x16xf32>
    %10 = arith.addf %8, %9 : vector<16x16xf32>
    %cst_9 = arith.constant 0.000000e+00 : f32
    %11 = vector.broadcast %cst_9 : f32 to vector<16x16xf32>
    %12 = arith.cmpf ogt, %10, %11 : vector<16x16xf32>
    %cst_10 = arith.constant 0.00999999977 : f32
    %13 = vector.broadcast %cst_10 : f32 to vector<16x16xf32>
    %14 = arith.mulf %13, %10 : vector<16x16xf32>
    %15 = arith.select %12, %10, %14 : vector<16x16xi1>, vector<16x16xf32>
    %c0_11 = arith.constant 0 : index
    %c0_12 = arith.constant 0 : index
    %c0_13 = arith.constant 0 : index
    %16 = vector.load %arg2[%c0_11, %c0_12, %c0_13] : memref<1x16x16xf32, #tpu.memory_space<vmem>>, vector<1x16x16xf32>
    %17 = vector.shape_cast %16 : vector<1x16x16xf32> to vector<16x16xf32>
    %cst_14 = arith.constant 0.000000e+00 : f32
    %18 = vector.broadcast %cst_14 : f32 to vector<16x16xf32>
    %19 = arith.cmpf ogt, %17, %18 : vector<16x16xf32>
    %cst_15 = arith.constant -9.99999995E+11 : f32
    %20 = vector.broadcast %cst_15 : f32 to vector<16x16xf32>
    %21 = arith.select %19, %15, %20 : vector<16x16xi1>, vector<16x16xf32>
    %cst_16 = arith.constant dense<0xFF800000> : vector<16xf32>
    %22 = vector.multi_reduction <maximumf>, %21, %cst_16 [1] : vector<16x16xf32> to vector<16xf32>
    %23 = vector.shape_cast %22 : vector<16xf32> to vector<16x1xf32>
    %24 = vector.broadcast %23 : vector<16x1xf32> to vector<16x16xf32>
    %25 = arith.subf %21, %24 : vector<16x16xf32>
    %26 = math.exp %25 : vector<16x16xf32>
    %cst_17 = arith.constant dense<0.000000e+00> : vector<16xf32>
    %27 = vector.multi_reduction <add>, %26, %cst_17 [1] : vector<16x16xf32> to vector<16xf32>
    %28 = vector.shape_cast %27 : vector<16xf32> to vector<16x1xf32>
    %29 = vector.broadcast %28 : vector<16x1xf32> to vector<16x16xf32>
    %30 = arith.divf %26, %29 : vector<16x16xf32>
    %cst_18 = arith.constant dense<0.000000e+00> : vector<16x128xf32>
    %31 = tpu.matmul %30, %3, %cst_18 {dimension_numbers = #tpu.dot_dimension_numbers<[1], [0], [0], [1], [0, 0, 1, 1], [], []>} : vector<16x16xf32>, vector<16x128xf32>, vector<16x128xf32> -> vector<16x128xf32>
    %cst_19 = arith.constant 0.000000e+00 : f32
    %32 = vector.broadcast %cst_19 : f32 to vector<16x128xf32>
    %33 = arith.cmpf ogt, %31, %32 : vector<16x128xf32>
    %cst_20 = arith.constant 0.000000e+00 : f32
    %34 = vector.broadcast %cst_20 : f32 to vector<16x128xf32>
    %35 = arith.minimumf %31, %34 : vector<16x128xf32>
    %36 = math.exp %35 : vector<16x128xf32>
    %cst_21 = arith.constant 1.000000e+00 : f32
    %37 = vector.broadcast %cst_21 : f32 to vector<16x128xf32>
    %38 = arith.subf %36, %37 : vector<16x128xf32>
    %39 = arith.select %33, %31, %38 : vector<16x128xi1>, vector<16x128xf32>
    %c0_22 = arith.constant 0 : index
    %c0_23 = arith.constant 0 : index
    %c0_24 = arith.constant 0 : index
    %40 = vector.load %arg5[%c0_22, %c0_23, %c0_24] : memref<1x16x128xf32, #tpu.memory_space<vmem>>, vector<1x16x128xf32>
    %41 = vector.shape_cast %40 : vector<1x16x128xf32> to vector<16x128xf32>
    %42 = vector.shape_cast %39 : vector<16x128xf32> to vector<1x16x128xf32>
    tpu.vector_store %arg5[%c0_22, %c0_23, %c0_24], %42 {strides = array<i32>} : memref<1x16x128xf32, #tpu.memory_space<vmem>>, vector<1x16x128xf32>,
    return
  }
  func.func @transform_0(%arg0: i32) -> (i32, i32, i32) {
    %c0_i32 = arith.constant 0 : i32
    %c0_i32_0 = arith.constant 0 : i32
    %c0_i32_1 = arith.constant 0 : i32
    return %arg0, %c0_i32, %c0_i32_0 : i32, i32, i32
  }
  func.func @transform_1(%arg0: i32) -> (i32, i32, i32) {
    %c0_i32 = arith.constant 0 : i32
    %c0_i32_0 = arith.constant 0 : i32
    %c0_i32_1 = arith.constant 0 : i32
    return %arg0, %c0_i32, %c0_i32_0 : i32, i32, i32
  }
  func.func @transform_2(%arg0: i32) -> (i32, i32) {
    %c0_i32 = arith.constant 0 : i32
    %c0_i32_0 = arith.constant 0 : i32
    %c0_i32_1 = arith.constant 0 : i32
    return %c0_i32, %c0_i32_0 : i32, i32
  }
  func.func @transform_3(%arg0: i32) -> (i32, i32) {
    %c0_i32 = arith.constant 0 : i32
    %c0_i32_0 = arith.constant 0 : i32
    %c0_i32_1 = arith.constant 0 : i32
    return %c0_i32, %c0_i32_0 : i32, i32
  }
  func.func @transform_4(%arg0: i32) -> (i32, i32, i32) {
    %c0_i32 = arith.constant 0 : i32
    %c0_i32_0 = arith.constant 0 : i32
    %c0_i32_1 = arith.constant 0 : i32
    return %arg0, %c0_i32, %c0_i32_0 : i32, i32, i32
  }
}

</mosaic_0001>

<llo_original>
// kernel: gragh_attention.1
$region0: #{gragh_attention.1}
  #allocation0 [shape = 'u32[]', space=smem, size = 0x4, offset = 0x4, fixed_abs, tag = 'smem constant byte address 0x4 - core index']
  #allocation1 [shape = 'u32[72,128]{1,0:T(1,128)}', space=vmem, size = 0x9000, scoped, tag = 'internal scratch']
  %s0 = inlined_call_operand.hbm [shape: f32[8,16,128], index: 0, kind: input, shape index: {}]
  %s1 = inlined_call_operand.hbm [shape: f32[8,16,16], index: 1, kind: input, shape index: {}]
  %s2 = inlined_call_operand.vmem [shape: f32[128,128], index: 2, kind: input, shape index: {}]
  %s3 = inlined_call_operand.vmem [shape: f32[2,128], index: 3, kind: input, shape index: {}]
  %s4 = inlined_call_operand.hbm [shape: f32[8,16,128], index: 4, kind: output, shape index: {}]
  %s5 = sld [smem:[#allocation0]]
  $region57: #{gragh_attention.1} parent=0
    _
  %s7 = ssub.s32 1, %s5
  %s8 = scalar_select 0, %s7, %s5
  $region1: #{gragh_attention.1} parent=0
    #allocation2 [shape = 'u8[16384]{0}', space=vmem, size = 0x4000, scoped, tag = 'input window, operand 0']
    #allocation3 [shape = 's32[2]{0}', space=sflag, size = 0x8, scoped, tag = 'scoped memory for gragh_attention.1']
    #allocation4 [shape = 's32[2]{0}', space=sflag, size = 0x8, scoped, tag = 'scoped memory for gragh_attention.1']
    #allocation5 [shape = 'u8[16384]{0}', space=vmem, size = 0x4000, scoped, tag = 'input window, operand 1']
    #allocation6 [shape = 's32[2]{0}', space=sflag, size = 0x8, scoped, tag = 'scoped memory for gragh_attention.1']
    #allocation7 [shape = 'u8[16384]{0}', space=vmem, size = 0x4000, scoped, tag = 'output window, operand 0']
    %9 = vsyncpa [#allocation3], 0
    %s10 = scalar_lea.sflag [#allocation3], 1
    %11 = vsyncpa %s10, 0
    %12 = vsyncpa [#allocation6], 0
    %s13 = scalar_lea.sflag [#allocation6], 1
    %14 = vsyncpa %s13, 0
    %15 = vsyncpa [#allocation4], 0
    %s16 = scalar_lea.sflag [#allocation4], 1
    %17 = vsyncpa %s16, 0
    loop: start=0, step=1, limit=10
    $region2: #{gragh_attention.1} parent=1 // loop_pre_header
      _
    $region3: #{gragh_attention.1} parent=1 // loop_header
      %s19 = sphi 0, %s23
      %p20 = scmp.ge.s32.totalorder %s19, 10
      %s29 = sphi 0, %s31
      %s32 = sphi 0, %s29
      %s33 = sphi 0, %s32
      %s49 = sphi 0, %s33
      %s55 = sphi 0, %s57
      %s58 = sphi 0, %s55
      %s59 = sphi 0, %s58
      %s75 = sphi 0, %s59
      %s79 = sphi 0, %s79
      %s81 = sphi 0, %s79
      %s82 = sphi 0, %s81
      %s96 = sphi 0, %s82
      %s100 = sphi 0, %s100
      %s102 = sphi 0, %s100
      %s103 = sphi 0, %s102
      %s117 = sphi 0, %s103
      %s123 = sphi 0, %s125
      %s126 = sphi 0, %s123
      %s127 = sphi 0, %s126
      %s143 = sphi 0, %s127
    $region4: #{gragh_attention.1} parent=1 // loop_header_branch
      %22 = sbr.rel (%p20) target = $region8
    $region5: #{gragh_attention.1} parent=1 // loop_body
      %s24 = ssub.s32 %s19, 1
      %s25 = ssub.s32 %s19, 2
      %s26 = sadd.s32 %s19, 1
      %s27 = ssub.s32 %s19, %s26
      %p28 = scmp.eq.s32.totalorder %s27, 0
      %s30 = sadd.s32 %s29, 1
      %s31 = scalar_select %p28, %s29, %s30
      %p34 = pneg %p28
      %p35 = scmp.eq.s32.totalorder %s19, 7
      %p36 = por %p34, %p35
      %p37 = scmp.ne.s32.totalorder %s29, %s32
      %p38 = scmp.eq.s32.totalorder %s19, 0
      %p39 = por %p37, %p38
      %p40 = scmp.ne.s32.totalorder %s29, %s32
      %p41 = scmp.eq.s32.totalorder %s24, 7
      %p42 = por %p40, %p41
      %p43 = scmp.ne.s32.totalorder %s32, %s33
      %p44 = scmp.eq.s32.totalorder %s24, 0
      %p45 = por %p43, %p44
      %p46 = scmp.ne.s32.totalorder %s32, %s33
      %p47 = scmp.eq.s32.totalorder %s25, 7
      %p48 = por %p46, %p47
      %p50 = scmp.ne.s32.totalorder %s33, %s49
      %p51 = scmp.eq.s32.totalorder %s25, 0
      %p52 = por %p50, %p51
      %s53 = ssub.s32 %s19, %s26
      %p54 = scmp.eq.s32.totalorder %s53, 0
      %s56 = sadd.s32 %s55, 1
      %s57 = scalar_select %p54, %s55, %s56
      %p60 = pneg %p54
      %p61 = scmp.eq.s32.totalorder %s19, 7
      %p62 = por %p60, %p61
      %p63 = scmp.ne.s32.totalorder %s55, %s58
      %p64 = scmp.eq.s32.totalorder %s19, 0
      %p65 = por %p63, %p64
      %p66 = scmp.ne.s32.totalorder %s55, %s58
      %p67 = scmp.eq.s32.totalorder %s24, 7
      %p68 = por %p66, %p67
      %p69 = scmp.ne.s32.totalorder %s58, %s59
      %p70 = scmp.eq.s32.totalorder %s24, 0
      %p71 = por %p69, %p70
      %p72 = scmp.ne.s32.totalorder %s58, %s59
      %p73 = scmp.eq.s32.totalorder %s25, 7
      %p74 = por %p72, %p73
      %p76 = scmp.ne.s32.totalorder %s59, %s75
      %p77 = scmp.eq.s32.totalorder %s25, 0
      %p78 = por %p76, %p77
      %s80 = sadd.s32 %s79, 1
      %p83 = scmp.eq.s32.totalorder %s19, 7
      %p84 = scmp.ne.s32.totalorder %s79, %s81
      %p85 = scmp.eq.s32.totalorder %s19, 0
      %p86 = por %p84, %p85
      %p87 = scmp.ne.s32.totalorder %s79, %s81
      %p88 = scmp.eq.s32.totalorder %s24, 7
      %p89 = por %p87, %p88
      %p90 = scmp.ne.s32.totalorder %s81, %s82
      %p91 = scmp.eq.s32.totalorder %s24, 0
      %p92 = por %p90, %p91
      %p93 = scmp.ne.s32.totalorder %s81, %s82
      %p94 = scmp.eq.s32.totalorder %s25, 7
      %p95 = por %p93, %p94
      %p97 = scmp.ne.s32.totalorder %s82, %s96
      %p98 = scmp.eq.s32.totalorder %s25, 0
      %p99 = por %p97, %p98
      %s101 = sadd.s32 %s100, 1
      %p104 = scmp.eq.s32.totalorder %s19, 7
      %p105 = scmp.ne.s32.totalorder %s100, %s102
      %p106 = scmp.eq.s32.totalorder %s19, 0
      %p107 = por %p105, %p106
      %p108 = scmp.ne.s32.totalorder %s100, %s102
      %p109 = scmp.eq.s32.totalorder %s24, 7
      %p110 = por %p108, %p109
      %p111 = scmp.ne.s32.totalorder %s102, %s103
      %p112 = scmp.eq.s32.totalorder %s24, 0
      %p113 = por %p111, %p112
      %p114 = scmp.ne.s32.totalorder %s102, %s103
      %p115 = scmp.eq.s32.totalorder %s25, 7
      %p116 = por %p114, %p115
      %p118 = scmp.ne.s32.totalorder %s103, %s117
      %p119 = scmp.eq.s32.totalorder %s25, 0
      %p120 = por %p118, %p119
      %s121 = ssub.s32 %s19, %s26
      %p122 = scmp.eq.s32.totalorder %s121, 0
      %s124 = sadd.s32 %s123, 1
      %s125 = scalar_select %p122, %s123, %s124
      %p128 = pneg %p122
      %p129 = scmp.eq.s32.totalorder %s19, 7
      %p130 = por %p128, %p129
      %p131 = scmp.ne.s32.totalorder %s123, %s126
      %p132 = scmp.eq.s32.totalorder %s19, 0
      %p133 = por %p131, %p132
      %p134 = scmp.ne.s32.totalorder %s123, %s126
      %p135 = scmp.eq.s32.totalorder %s24, 7
      %p136 = por %p134, %p135
      %p137 = scmp.ne.s32.totalorder %s126, %s127
      %p138 = scmp.eq.s32.totalorder %s24, 0
      %p139 = por %p137, %p138
      %p140 = scmp.ne.s32.totalorder %s126, %s127
      %p141 = scmp.eq.s32.totalorder %s25, 7
      %p142 = por %p140, %p141
      %p144 = scmp.ne.s32.totalorder %s127, %s143
      %p145 = scmp.eq.s32.totalorder %s25, 0
      %p146 = por %p144, %p145
      %p147 = scmp.le.s32.totalorder 1, %s19
      %p148 = scmp.lt.s32.totalorder %s19, 9
      %p149 = pnand %p147, %p148
      %p150 = pneg %p149
      // Predicated region
      $region9: #{gragh_attention.1} parent=5 // pred_check
        _
      $region10: #{gragh_attention.1} parent=5 // pred_check_branch
        %152 = sbr.rel (%p149) target = $region12
      $region11: #{gragh_attention.1} parent=5 // pred_region
        %s153 = ssub.s32 %s19, 1
        // Predicated region
        $region13: #{gragh_attention.1} parent=11 // pred_check
          %p154 = pneg %p92
        $region14: #{gragh_attention.1} parent=11 // pred_check_branch
          %156 = sbr.rel (%p154) target = $region16
        $region15: #{gragh_attention.1} parent=11 // pred_region
          _
        $region16: #{gragh_attention.1} parent=11 // pred_fallthru
          _
        // Predicated region
        $region17: #{gragh_attention.1} parent=11 // pred_check
          %p157 = pneg %p113
        $region18: #{gragh_attention.1} parent=11 // pred_check_branch
          %159 = sbr.rel (%p157) target = $region20
        $region19: #{gragh_attention.1} parent=11 // pred_region
          _
        $region20: #{gragh_attention.1} parent=11 // pred_fallthru
          _
      $region12: #{gragh_attention.1} parent=5 // pred_fallthru
        _
      %p160 = scmp.lt.s32.totalorder %s19, 8
      // Predicated region
      $region21: #{gragh_attention.1} parent=5 // pred_check
        %p161 = pneg %p160
      $region22: #{gragh_attention.1} parent=5 // pred_check_branch
        %163 = sbr.rel (%p161) target = $region24
      $region23: #{gragh_attention.1} parent=5 // pred_region
        // Predicated region
        $region25: #{gragh_attention.1} parent=23 // pred_check
          %p164 = pneg %p39
        $region26: #{gragh_attention.1} parent=23 // pred_check_branch
          %166 = sbr.rel (%p164) target = $region28
        $region27: #{gragh_attention.1} parent=23 // pred_region
          %s167 = sand.u32 %s29, 1
          %s168 = scalar_lea.sflag [#allocation3], %s167
          %s169 = sand.u32 %s29, 1
          %s170 = smul.addr %s169, 16
          %s171 = scalar_lea.vmem [#allocation2], %s170
          %173 = vsyncadd %s168, 0
          %s174 = smul.addr %s19, 2
          %s175 = smul.addr %s174, 8
          %s176 = scalar_lea.hbm %s0, %s175
          %s177 = sshll.u32 %s176, 4
          %s178 = int_to_ptr.hbm [resolvable:$true] %s177
          %s179 = sshll.u32 %s171, 4
          %s180 = int_to_ptr.vmem [resolvable:$true] %s179
          %185 = dma.hbm_to_vmem [thread:$0]  %s178, 256, %s180, %s168, 128, 128, 8
        $region28: #{gragh_attention.1} parent=23 // pred_fallthru
          _
        // Predicated region
        $region29: #{gragh_attention.1} parent=23 // pred_check
          %p186 = pneg %p65
        $region30: #{gragh_attention.1} parent=23 // pred_check_branch
          %188 = sbr.rel (%p186) target = $region32
        $region31: #{gragh_attention.1} parent=23 // pred_region
          %s189 = sand.u32 %s55, 1
          %s190 = scalar_lea.sflag [#allocation6], %s189
          %s191 = sand.u32 %s55, 1
          %s192 = smul.addr %s191, 16
          %s193 = scalar_lea.vmem [#allocation5], %s192
          %195 = vsyncadd %s190, 0
          %s196 = smul.addr %s19, 2
          %s197 = smul.addr %s196, 8
          %s198 = scalar_lea.hbm %s1, %s197
          %s199 = sshll.u32 %s198, 4
          %s200 = int_to_ptr.hbm [resolvable:$true] %s199
          %s201 = sshll.u32 %s193, 4
          %s202 = int_to_ptr.vmem [resolvable:$true] %s201
          %207 = dma.hbm_to_vmem [thread:$0]  %s200, 256, %s202, %s190, 128, 128, 8
        $region32: #{gragh_attention.1} parent=23 // pred_fallthru
          _
      $region24: #{gragh_attention.1} parent=5 // pred_fallthru
        _
      %p208 = scmp.le.s32.totalorder 1, %s19
      %p209 = scmp.lt.s32.totalorder %s19, 9
      %p210 = pnand %p208, %p209
      %p211 = pneg %p210
      // Predicated region
      $region33: #{gragh_attention.1} parent=5 // pred_check
        _
      $region34: #{gragh_attention.1} parent=5 // pred_check_branch
        %213 = sbr.rel (%p210) target = $region36
      $region35: #{gragh_attention.1} parent=5 // pred_region
        %s214 = ssub.s32 %s19, 1
        %s215 = sand.u32 %s32, 1
        %s216 = scalar_lea.sflag [#allocation3], %s215
        %s217 = sand.u32 %s32, 1
        %s218 = smul.addr %s217, 16
        %s219 = scalar_lea.vmem [#allocation2], %s218
        // Predicated region
        $region37: #{gragh_attention.1} parent=35 // pred_check
          %p220 = pneg %p45
        $region38: #{gragh_attention.1} parent=35 // pred_check_branch
          %222 = sbr.rel (%p220) target = $region40
        $region39: #{gragh_attention.1} parent=35 // pred_region
          %224 = dma.done %s216, 256
        $region40: #{gragh_attention.1} parent=35 // pred_fallthru
          _
        %s225 = sand.u32 %s58, 1
        %s226 = scalar_lea.sflag [#allocation6], %s225
        %s227 = sand.u32 %s58, 1
        %s228 = smul.addr %s227, 16
        %s229 = scalar_lea.vmem [#allocation5], %s228
        // Predicated region
        $region41: #{gragh_attention.1} parent=35 // pred_check
          %p230 = pneg %p71
        $region42: #{gragh_attention.1} parent=35 // pred_check_branch
          %232 = sbr.rel (%p230) target = $region44
        $region43: #{gragh_attention.1} parent=35 // pred_region
          %234 = dma.done %s226, 256
        $region44: #{gragh_attention.1} parent=35 // pred_fallthru
          _
        %s235 = sand.u32 %s32, 1
        %s236 = scalar_lea.sflag [#allocation3], %s235
        %s237 = sand.u32 %s32, 1
        %s238 = smul.addr %s237, 16
        %s239 = scalar_lea.vmem [#allocation2], %s238
        %p240 = pneg %p45
        %p241 = pneg %p42
        %s242 = sand.u32 %s58, 1
        %s243 = scalar_lea.sflag [#allocation6], %s242
        %s244 = sand.u32 %s58, 1
        %s245 = smul.addr %s244, 16
        %s246 = scalar_lea.vmem [#allocation5], %s245
        %p247 = pneg %p71
        %p248 = pneg %p68
        %p249 = pneg %p92
        %p250 = pneg %p89
        %p251 = pneg %p113
        %p252 = pneg %p110
        %p253 = pneg %p139
        %p254 = pneg %p136
        %s255 = sand.u32 %s126, 1
        %s256 = scalar_lea.sflag [#allocation4], %s255
        %s257 = sand.u32 %s126, 1
        %s258 = smul.addr %s257, 16
        %s259 = scalar_lea.vmem [#allocation7], %s258
        %v260 = vld [vmem:[%s219] sm:$0xff]
        %v261 = vld [vmem:[%s219 + $0x8] sm:$0xff]
        %v262 = vld [vmem:[%s2] sm:$0xff]
        %v263 = vld [vmem:[%s2 + $0x8] sm:$0xff]
        %v264 = vld [vmem:[%s2 + $0x10] sm:$0xff]
        %v265 = vld [vmem:[%s2 + $0x18] sm:$0xff]
        %v266 = vld [vmem:[%s2 + $0x20] sm:$0xff]
        %v267 = vld [vmem:[%s2 + $0x28] sm:$0xff]
        %v268 = vld [vmem:[%s2 + $0x30] sm:$0xff]
        %v269 = vld [vmem:[%s2 + $0x38] sm:$0xff]
        %v270 = vld [vmem:[%s2 + $0x40] sm:$0xff]
        %v271 = vld [vmem:[%s2 + $0x48] sm:$0xff]
        %v272 = vld [vmem:[%s2 + $0x50] sm:$0xff]
        %v273 = vld [vmem:[%s2 + $0x58] sm:$0xff]
        %v274 = vld [vmem:[%s2 + $0x60] sm:$0xff]
        %v275 = vld [vmem:[%s2 + $0x68] sm:$0xff]
        %v276 = vld [vmem:[%s2 + $0x70] sm:$0xff]
        %v277 = vld [vmem:[%s2 + $0x78] sm:$0xff]
        %278 = vmatpush.msra.mxu0 %v277
        %279 = vmatpush.msra.mxu0 %v276
        %280 = vmatpush.msra.mxu0 %v275
        %281 = vmatpush.msra.mxu0 %v274
        %282 = vmatpush.msra.mxu0 %v273
        %283 = vmatpush.msra.mxu0 %v272
        %284 = vmatpush.msra.mxu0 %v271
        %285 = vmatpush.msra.mxu0 %v270
        %286 = vmatpush.msra.mxu0 %v269
        %287 = vmatpush.msra.mxu0 %v268
        %288 = vmatpush.msra.mxu0 %v267
        %289 = vmatpush.msra.mxu0 %v266
        %290 = vmatpush.msra.mxu0 %v265
        %291 = vmatpush.msra.mxu0 %v264
        %292 = vmatpush.msra.mxu0 %v263
        %293 = vmatpush.msra.mxu0 %v262
        %294 = vmatmul.f32.gmra.mxu0 %v260
        %v295 = vpop.f32.mrf.mxu0
        %v296 = vadd.f32 0.0, %v295
        %297 = vmatmul.f32.gmra.mxu0 %v261
        %v298 = vpop.f32.mrf.mxu0
        %v299 = vadd.f32 0.0, %v298
        %300 = vdwg.mxu0
        %v301 = vld [vmem:[%s3] sm:$0x1]
        %v302 = vperm.slane %v301, 0
        %v303 = vmul.f32 %v260, %v302
        %v304 = vmul.f32 %v261, %v302
        %305 = vadd.xlane.f32.xlu0 %v303
        %v306 = vpop.xlane.xlu0 %305
        %307 = vadd.xlane.f32.xlu0 %v304
        %v308 = vpop.xlane.xlu0 %307
        %v309 = vld [vmem:[%s3 + $0x1] sm:$0x1]
        %310 = vmatpush.xpose.msra.mxu0 0.0
        %311 = vmatpush.xpose.msra.mxu0 0.0
        %312 = vmatpush.xpose.msra.mxu0 0.0
        %313 = vmatpush.xpose.msra.mxu0 0.0
        %314 = vmatpush.xpose.msra.mxu0 0.0
        %315 = vmatpush.xpose.msra.mxu0 0.0
        %316 = vmatpush.xpose.msra.mxu0 0.0
        %317 = vmatpush.xpose.msra.mxu0 0.0
        %318 = vmatpush.xpose.msra.mxu0 0.0
        %319 = vmatpush.xpose.msra.mxu0 0.0
        %320 = vmatpush.xpose.msra.mxu0 0.0
        %321 = vmatpush.xpose.msra.mxu0 0.0
        %322 = vmatpush.xpose.msra.mxu0 0.0
        %323 = vmatpush.xpose.msra.mxu0 0.0
        %324 = vmatpush.xpose.msra.mxu0 %v261
        %325 = vmatpush.xpose.msra.mxu0 %v260
        %326 = vmatmul.f32.gmra.mxu0 %v309
        %v327 = vpop.f32.mrf.mxu0
        %v328 = vadd.f32 0.0, %v327
        %329 = vdwg.mxu0
        %v330 = vperm.slane %v328, 0
        %v331 = vadd.f32 %v306, %v330
        %v332 = vadd.f32 %v308, %v330
        %vm333 = vcmp.gt.f32.partialorder %v331, 0.0
        %vm334 = vcmp.gt.f32.partialorder %v332, 0.0
        %v335 = vmul.f32 %v331, 0.01
        %v336 = vmul.f32 %v332, 0.01
        %v337 = vsel %vm333, %v331, %v335
        %v338 = vsel %vm334, %v332, %v336
        %v339 = vld [vmem:[%s229] sm:$0xff]
        %v340 = vld [vmem:[%s229 + $0x8] sm:$0xff]
        %vm341 = vcmp.gt.f32.partialorder %v339, 0.0
        %vm342 = vcmp.gt.f32.partialorder %v340, 0.0
        %v343 = vsel %vm341, %v337, -1e+12
        %v344 = vsel %vm342, %v338, -1e+12
        %vm345 = vcmask 130048
        %v346 = vsel %vm345, %v343, -inf
        %347 = vmax.xlane.f32.xlu0 %v346
        %v348 = vpop.xlane.xlu0 %347
        %v349 = vsel %vm345, %v344, -inf
        %350 = vmax.xlane.f32.xlu0 %v349
        %v351 = vpop.xlane.xlu0 %350
        %v352 = vsub.f32 %v343, %v348
        %v353 = vsub.f32 %v344, %v351
        %v354 = vmul.f32 %v352, 1.442695
        %v355 = vpow.pop %v354
        %v356 = vmul.f32 %v353, 1.442695
        %v357 = vpow.pop %v356
        %v358 = vsel %vm345, %v355, 0.0
        %359 = vadd.xlane.f32.xlu0 %v358
        %v360 = vpop.xlane.xlu0 %359
        %v361 = vsel %vm345, %v357, 0.0
        %362 = vadd.xlane.f32.xlu0 %v361
        %v363 = vpop.xlane.xlu0 %362
        %v364 = vrcp.pop %v360
        %v365 = vmul.f32 %v360, %v364
        %v366 = vsub.f32 1.0, %v365
        %v367 = vmul.f32 %v364, %v366
        %v368 = vadd.f32 %v364, %v367
        %vm369 = vweird.f32 %v360
        %vm370 = vweird.f32 %v364
        %vm371 = vmor %vm369, %vm370
        %v372 = vsel %vm371, %v364, %v368
        %v373 = vand.u32 2147483647, %v360
        %vm374 = vcmp.eq.f32.partialorder %v373, 8.507059e+37
        %v375 = vand.u32 %v360, 2147483648
        %v376 = vor.u32 1.1754944e-38, %v375
        %v377 = vsel %vm374, %v376, %v372
        %v378 = vmul.f32 %v355, %v377
        %v379 = vrcp.pop %v363
        %v380 = vmul.f32 %v363, %v379
        %v381 = vsub.f32 1.0, %v380
        %v382 = vmul.f32 %v379, %v381
        %v383 = vadd.f32 %v379, %v382
        %vm384 = vweird.f32 %v363
        %vm385 = vweird.f32 %v379
        %vm386 = vmor %vm384, %vm385
        %v387 = vsel %vm386, %v379, %v383
        %v388 = vand.u32 2147483647, %v363
        %vm389 = vcmp.eq.f32.partialorder %v388, 8.507059e+37
        %v390 = vand.u32 %v363, 2147483648
        %v391 = vor.u32 1.1754944e-38, %v390
        %v392 = vsel %vm389, %v391, %v387
        %v393 = vmul.f32 %v357, %v392
        %v395 = vsel %vm345, %v378, 0
        %v398 = vsel %vm345, %v393, 0
        %400 = vmatpush.msra.mxu0 0.0
        %401 = vmatpush.msra.mxu0 0.0
        %402 = vmatpush.msra.mxu0 0.0
        %403 = vmatpush.msra.mxu0 0.0
        %404 = vmatpush.msra.mxu0 0.0
        %405 = vmatpush.msra.mxu0 0.0
        %406 = vmatpush.msra.mxu0 0.0
        %407 = vmatpush.msra.mxu0 0.0
        %408 = vmatpush.msra.mxu0 0.0
        %409 = vmatpush.msra.mxu0 0.0
        %410 = vmatpush.msra.mxu0 0.0
        %411 = vmatpush.msra.mxu0 0.0
        %412 = vmatpush.msra.mxu0 0.0
        %413 = vmatpush.msra.mxu0 0.0
        %414 = vmatpush.msra.mxu0 %v299
        %415 = vmatpush.msra.mxu0 %v296
        %416 = vmatmul.f32.gmra.mxu0 %v395
        %v417 = vpop.f32.mrf.mxu0
        %v418 = vadd.f32 0.0, %v417
        %419 = vmatmul.f32.gmra.mxu0 %v398
        %v420 = vpop.f32.mrf.mxu0
        %v421 = vadd.f32 0.0, %v420
        %422 = vdwg.mxu0
        %vm423 = vcmp.gt.f32.partialorder %v418, 0.0
        %vm424 = vcmp.gt.f32.partialorder %v421, 0.0
        %v425 = vmin.f32 %v418, 0.0
        %v426 = vmin.f32 %v421, 0.0
        %v427 = vmul.f32 %v425, 1.442695
        %v428 = vpow.pop %v427
        %v429 = vmul.f32 %v426, 1.442695
        %v430 = vpow.pop %v429
        %v431 = vsub.f32 %v428, 1.0
        %v432 = vsub.f32 %v430, 1.0
        %v433 = vsel %vm423, %v418, %v431
        %v434 = vsel %vm424, %v421, %v432
        %435 = vst [vmem:[%s259] sm:$0xff] %v433
        %436 = vst [vmem:[%s259 + $0x8] sm:$0xff] %v434
        %s437 = sand.u32 %s126, 1
        %s438 = scalar_lea.sflag [#allocation4], %s437
        %s439 = sand.u32 %s126, 1
        %s440 = smul.addr %s439, 16
        %s441 = scalar_lea.vmem [#allocation7], %s440
        // Predicated region
        $region45: #{gragh_attention.1} parent=35 // pred_check
          %p442 = pneg %p136
        $region46: #{gragh_attention.1} parent=35 // pred_check_branch
          %444 = sbr.rel (%p442) target = $region48
        $region47: #{gragh_attention.1} parent=35 // pred_region
          %446 = vsyncadd %s438, 0
          %s447 = smul.addr %s24, 2
          %s448 = smul.addr %s447, 8
          %s449 = scalar_lea.hbm %s4, %s448
          %s450 = sshll.u32 %s441, 4
          %s451 = int_to_ptr.vmem [resolvable:$true] %s450
          %s452 = sshll.u32 %s449, 4
          %s453 = int_to_ptr.hbm [resolvable:$true] %s452
          %458 = dma.vmem_to_hbm [thread:$0]  %s451, 256, %s453, %s438, 128, 128, 8
        $region48: #{gragh_attention.1} parent=35 // pred_fallthru
          _
      $region36: #{gragh_attention.1} parent=5 // pred_fallthru
        _
      %p459 = scmp.le.s32.totalorder 2, %s19
      // Predicated region
      $region49: #{gragh_attention.1} parent=5 // pred_check
        %p460 = pneg %p459
      $region50: #{gragh_attention.1} parent=5 // pred_check_branch
        %462 = sbr.rel (%p460) target = $region52
      $region51: #{gragh_attention.1} parent=5 // pred_region
        %s463 = ssub.s32 %s19, 2
        // Predicated region
        $region53: #{gragh_attention.1} parent=51 // pred_check
          %p464 = pneg %p142
        $region54: #{gragh_attention.1} parent=51 // pred_check_branch
          %466 = sbr.rel (%p464) target = $region56
        $region55: #{gragh_attention.1} parent=51 // pred_region
          %s467 = sand.u32 %s127, 1
          %s468 = scalar_lea.sflag [#allocation4], %s467
          %s469 = sand.u32 %s127, 1
          %s470 = smul.addr %s469, 16
          %s471 = scalar_lea.vmem [#allocation7], %s470
          %473 = dma.done %s468, 256
        $region56: #{gragh_attention.1} parent=51 // pred_fallthru
          _
      $region52: #{gragh_attention.1} parent=5 // pred_fallthru
        _
    $region6: #{gragh_attention.1} parent=1 // loop_footer
      %s23 = sadd.s32 1, %s19
    $region7: #{gragh_attention.1} parent=1 // loop_footer_branch
      %18 = sbr.rel target = $region3
    $region8: #{gragh_attention.1} parent=1 // loop_exit
      _
    %474 = vsyncpa [#allocation3], 1
    %s475 = scalar_lea.sflag [#allocation3], 1
    %476 = vsyncpa %s475, 1
    %477 = vsyncpa [#allocation6], 1
    %s478 = scalar_lea.sflag [#allocation6], 1
    %479 = vsyncpa %s478, 1
    %480 = vsyncpa [#allocation4], 1
    %s481 = scalar_lea.sflag [#allocation4], 1
    %482 = vsyncpa %s481, 1

</llo_original>
